<compile_context>
chip_gen: v7x
topology: tpu7x:2x2x1
jax: 0.10.0
libtpu: 0.0.40
codegen_flags: <defaults>
</compile_context>

<pallas_src>
import jax
import jax.numpy as jnp
from jax.experimental import pallas as pl
from jax.experimental.pallas import tpu as pltpu

KH, KW = 3, 3          # kernel size
SH, SW = 1, 1          # stride
PH, PW = 1, 1          # padding


def _avgpool2d_kernel(x_ref, o_ref, xp_ref):
    """One grid step: (Bc, H, W) block of images -> (Bc, H, W) pooled block.

    x_ref : (Bc, H, W)       input block (original dtype)
    o_ref : (Bc, H, W)       output block (original dtype)
    xp_ref: (Bc, H+2, W+2)   f32 VMEM scratch holding the zero-haloed block
    """
    _, H, W = o_ref.shape

    # Zero halo (count_include_pad=True: padded zeros contribute to the sum and
    # the divisor is always KH*KW), then drop the block into the interior.
    xp_ref[...] = jnp.zeros_like(xp_ref)
    xp_ref[:, 1:H + 1, 1:W + 1] = x_ref[...].astype(jnp.float32)
    xp = xp_ref[...]

    # Separable 3x3 window sum: 1x3 row sum, then 3x1 column sum (4 adds).
    rs = xp[:, :, 0:W] + xp[:, :, 1:W + 1] + xp[:, :, 2:W + 2]        # (Bc, H+2, W)
    acc = rs[:, 0:H, :] + rs[:, 1:H + 1, :] + rs[:, 2:H + 2, :]       # (Bc, H, W)

    o_ref[...] = (acc * (1.0 / (KH * KW))).astype(o_ref.dtype)


def _choose_block_channels(NC, H, W, itemsize):
    """Pick how many (H, W) images to process per grid step."""
    # ~2 MiB input blocks: big enough to amortize per-step overhead, small
    # enough that 2x input + 2x output double buffers plus the f32 halo scratch
    # fit comfortably in every generation's scoped VMEM (v5e 16 MiB default,
    # v7x 64 MiB physical).
    target_bytes = 2 * 1024 * 1024
    bc = max(1, min(NC, target_bytes // max(1, H * W * itemsize)))
    while NC % bc:
        bc -= 1
    # Prefer >= 2 grid steps when possible so v7x megacore can shard them.
    if NC // bc < 2 and NC >= 2:
        bc = NC // 2
        while NC % bc:
            bc -= 1
    return bc


def avg_pool2d(x):
    """x: (N, C, H, W) float array. Returns (N, C, H_out, W_out)."""
    N, C, H, W = x.shape
    H_out = (H + 2 * PH - KH) // SH + 1
    W_out = (W + 2 * PW - KW) // SW + 1
    assert (SH, SW) == (1, 1) and (KH, KW) == (3, 3) and (PH, PW) == (1, 1), \
        "kernel specialized for 3x3 / stride 1 / pad 1"
    assert (H_out, W_out) == (H, W)

    NC = N * C
    x2 = x.reshape(NC, H, W)                      # free: metadata-only reshape
    bc = _choose_block_channels(NC, H, W, x.dtype.itemsize)
    grid = (NC // bc,)

    # VMEM budget: double-buffered in/out blocks + f32 halo scratch, 2x
    # headroom, capped well below v7x's 64 MiB per-core VMEM.
    blk_bytes = bc * H * W * x.dtype.itemsize
    scratch_bytes = bc * (H + 2) * (W + 2) * 4
    vmem_limit = int(min(48 * 1024 * 1024,
                         max(4 * 1024 * 1024,
                             2 * (4 * blk_bytes + scratch_bytes))))

    y2 = pl.pallas_call(
        _avgpool2d_kernel,
        out_shape=jax.ShapeDtypeStruct((NC, H_out, W_out), x.dtype),
        grid_spec=pltpu.PrefetchScalarGridSpec(
            num_scalar_prefetch=0,
            grid=grid,
            in_specs=[pl.BlockSpec((bc, H, W), lambda i: (i, 0, 0))],
            out_specs=pl.BlockSpec((bc, H_out, W_out), lambda i: (i, 0, 0)),
            scratch_shapes=[pltpu.VMEM((bc, H + 2, W + 2), jnp.float32)],
        ),
        compiler_params=pltpu.CompilerParams(
            dimension_semantics=("parallel",),
            vmem_limit_bytes=vmem_limit,
        ),
    )(x2)
    return y2.reshape(N, C, H_out, W_out)


def _reference_avg_pool2d(x):
    # Pure-JAX reference with identical semantics (count_include_pad=True).
    N, C, H, W = x.shape
    xp = jnp.pad(x, ((0, 0), (0, 0), (PH, PH), (PW, PW)))
    acc = jnp.zeros((N, C, H, W), jnp.float32)
    for di in range(KH):
        for dj in range(KW):
            acc = acc + xp[:, :, di:di + H, dj:dj + W].astype(jnp.float32)
    return (acc / (KH * KW)).astype(x.dtype)


if __name__ == "__main__":
    key = jax.random.PRNGKey(0)
    x = jax.random.normal(key, (2, 4, 16, 16), dtype=jnp.float32)

    y = avg_pool2d(x)
    y = jax.block_until_ready(y)

    y_ref = _reference_avg_pool2d(x)
    assert y.shape == y_ref.shape
    assert jnp.allclose(y, y_ref, atol=1e-5, rtol=1e-5)

    print("KERNEL_OK")
</pallas_src>

<mosaic_0001>
module attributes {stable_mosaic.version = 11 : i64} {
  func.func @_avgpool2d_kernel(%arg0: i32, %arg1: memref<4x16x16xf32, #tpu.memory_space<vmem>>, %arg2: memref<4x16x16xf32, #tpu.memory_space<vmem>>, %arg3: memref<4x18x18xf32, #tpu.memory_space<vmem>>) attributes {dimension_semantics = [#tpu.dimension_semantics<parallel>], iteration_bounds = array<i64: 2>, scalar_prefetch = 0 : i64, scratch_operands = 1 : i64, tpu.core_type = #tpu.core_type<tc>, window_params = [{transform_indices = @transform_0, window_bounds = array<i64: 4, 16, 16>}, {transform_indices = @transform_1, window_bounds = array<i64: 4, 16, 16>}]} {
    %cst = arith.constant 0.000000e+00 : f32
    %0 = vector.broadcast %cst : f32 to vector<4x18x18xf32>
    %c0 = arith.constant 0 : index
    %c0_0 = arith.constant 0 : index
    %c0_1 = arith.constant 0 : index
    %1 = vector.load %arg3[%c0, %c0_0, %c0_1] : memref<4x18x18xf32, #tpu.memory_space<vmem>>, vector<4x18x18xf32>
    tpu.vector_store %arg3[%c0, %c0_0, %c0_1], %0 {strides = array<i32>} : memref<4x18x18xf32, #tpu.memory_space<vmem>>, vector<4x18x18xf32>,
    %c0_2 = arith.constant 0 : index
    %c0_3 = arith.constant 0 : index
    %c0_4 = arith.constant 0 : index
    %2 = vector.load %arg1[%c0_2, %c0_3, %c0_4] : memref<4x16x16xf32, #tpu.memory_space<vmem>>, vector<4x16x16xf32>
    %c0_5 = arith.constant 0 : index
    %c1 = arith.constant 1 : index
    %c1_6 = arith.constant 1 : index
    %3 = vector.load %arg3[%c0_5, %c1, %c1_6] : memref<4x18x18xf32, #tpu.memory_space<vmem>>, vector<4x16x16xf32>
    tpu.vector_store %arg3[%c0_5, %c1, %c1_6], %2 {strides = array<i32>} : memref<4x18x18xf32, #tpu.memory_space<vmem>>, vector<4x16x16xf32>,
    %c0_7 = arith.constant 0 : index
    %c0_8 = arith.constant 0 : index
    %c0_9 = arith.constant 0 : index
    %4 = vector.load %arg3[%c0_7, %c0_8, %c0_9] : memref<4x18x18xf32, #tpu.memory_space<vmem>>, vector<4x18x18xf32>
    %5 = vector.extract_strided_slice %4 {offsets = [0, 0, 0], sizes = [4, 18, 16], strides = [1, 1, 1]} : vector<4x18x18xf32> to vector<4x18x16xf32>
    %6 = vector.extract_strided_slice %4 {offsets = [0, 0, 1], sizes = [4, 18, 16], strides = [1, 1, 1]} : vector<4x18x18xf32> to vector<4x18x16xf32>
    %7 = arith.addf %5, %6 : vector<4x18x16xf32>
    %8 = vector.extract_strided_slice %4 {offsets = [0, 0, 2], sizes = [4, 18, 16], strides = [1, 1, 1]} : vector<4x18x18xf32> to vector<4x18x16xf32>
    %9 = arith.addf %7, %8 : vector<4x18x16xf32>
    %10 = vector.extract_strided_slice %9 {offsets = [0, 0, 0], sizes = [4, 16, 16], strides = [1, 1, 1]} : vector<4x18x16xf32> to vector<4x16x16xf32>
    %11 = vector.extract_strided_slice %9 {offsets = [0, 1, 0], sizes = [4, 16, 16], strides = [1, 1, 1]} : vector<4x18x16xf32> to vector<4x16x16xf32>
    %12 = arith.addf %10, %11 : vector<4x16x16xf32>
    %13 = vector.extract_strided_slice %9 {offsets = [0, 2, 0], sizes = [4, 16, 16], strides = [1, 1, 1]} : vector<4x18x16xf32> to vector<4x16x16xf32>
    %14 = arith.addf %12, %13 : vector<4x16x16xf32>
    %cst_10 = arith.constant 0.111111112 : f32
    %15 = vector.broadcast %cst_10 : f32 to vector<4x16x16xf32>
    %16 = arith.mulf %14, %15 : vector<4x16x16xf32>
    %c0_11 = arith.constant 0 : index
    %c0_12 = arith.constant 0 : index
    %c0_13 = arith.constant 0 : index
    %17 = vector.load %arg2[%c0_11, %c0_12, %c0_13] : memref<4x16x16xf32, #tpu.memory_space<vmem>>, vector<4x16x16xf32>
    tpu.vector_store %arg2[%c0_11, %c0_12, %c0_13], %16 {strides = array<i32>} : memref<4x16x16xf32, #tpu.memory_space<vmem>>, vector<4x16x16xf32>,
    return
  }
  func.func @transform_0(%arg0: i32) -> (i32, i32, i32) {
    %c0_i32 = arith.constant 0 : i32
    %c0_i32_0 = arith.constant 0 : i32
    %c0_i32_1 = arith.constant 0 : i32
    return %arg0, %c0_i32, %c0_i32_0 : i32, i32, i32
  }
  func.func @transform_1(%arg0: i32) -> (i32, i32, i32) {
    %c0_i32 = arith.constant 0 : i32
    %c0_i32_0 = arith.constant 0 : i32
    %c0_i32_1 = arith.constant 0 : i32
    return %arg0, %c0_i32, %c0_i32_0 : i32, i32, i32
  }
}

</mosaic_0001>

<llo_original>
// kernel: tpu_custom_call.1
$region0: #{tpu_custom_call.1}
  #allocation0 [shape = 'u32[]', space=smem, size = 0x4, offset = 0x4, fixed_abs, tag = 'smem constant byte address 0x4 - core index']
  #allocation1 [shape = 'u32[144,128]{1,0:T(1,128)}', space=vmem, size = 0x12000, scoped, tag = 'internal scratch']
  #allocation2 [shape = 'f32[4,18,18]{2,1,0:T(8,128)}', space=vmem, size = 0xc000, scoped, tag = 'scratch operand']
  %s0 = inlined_call_operand.hbm [shape: f32[8,16,16], index: 0, kind: input, shape index: {}]
  %s1 = inlined_call_operand.hbm [shape: f32[8,16,16], index: 1, kind: output, shape index: {}]
  %s2 = sld [smem:[#allocation0]]
  $region41: #{tpu_custom_call.1} parent=0
    _
  %s4 = ssub.s32 1, %s2
  %s5 = scalar_select 0, %s4, %s2
  $region1: #{tpu_custom_call.1} parent=0
    #allocation3 [shape = 'u8[65536]{0}', space=vmem, size = 0x10000, scoped, tag = 'input window, operand 0']
    #allocation4 [shape = 's32[2]{0}', space=sflag, size = 0x8, scoped, tag = 'scoped memory for tpu_custom_call.1']
    #allocation5 [shape = 's32[2]{0}', space=sflag, size = 0x8, scoped, tag = 'scoped memory for tpu_custom_call.1']
    #allocation6 [shape = 'u8[65536]{0}', space=vmem, size = 0x10000, scoped, tag = 'output window, operand 0']
    %6 = vsyncpa [#allocation4], 0
    %s7 = scalar_lea.sflag [#allocation4], 1
    %8 = vsyncpa %s7, 0
    %9 = vsyncpa [#allocation5], 0
    %s10 = scalar_lea.sflag [#allocation5], 1
    %11 = vsyncpa %s10, 0
    loop: start=0, step=1, limit=4
    $region2: #{tpu_custom_call.1} parent=1 // loop_pre_header
      _
    $region3: #{tpu_custom_call.1} parent=1 // loop_header
      %s13 = sphi 0, %s17
      %p14 = scmp.ge.s32.totalorder %s13, 4
      %s23 = sphi 0, %s25
      %s26 = sphi 0, %s23
      %s27 = sphi 0, %s26
      %s43 = sphi 0, %s27
      %s49 = sphi 0, %s51
      %s52 = sphi 0, %s49
      %s53 = sphi 0, %s52
      %s69 = sphi 0, %s53
    $region4: #{tpu_custom_call.1} parent=1 // loop_header_branch
      %16 = sbr.rel (%p14) target = $region8
    $region5: #{tpu_custom_call.1} parent=1 // loop_body
      %s18 = ssub.s32 %s13, 1
      %s19 = ssub.s32 %s13, 2
      %s20 = sadd.s32 %s13, 1
      %s21 = ssub.s32 %s13, %s20
      %p22 = scmp.eq.s32.totalorder %s21, 0
      %s24 = sadd.s32 %s23, 1
      %s25 = scalar_select %p22, %s23, %s24
      %p28 = pneg %p22
      %p29 = scmp.eq.s32.totalorder %s13, 1
      %p30 = por %p28, %p29
      %p31 = scmp.ne.s32.totalorder %s23, %s26
      %p32 = scmp.eq.s32.totalorder %s13, 0
      %p33 = por %p31, %p32
      %p34 = scmp.ne.s32.totalorder %s23, %s26
      %p35 = scmp.eq.s32.totalorder %s18, 1
      %p36 = por %p34, %p35
      %p37 = scmp.ne.s32.totalorder %s26, %s27
      %p38 = scmp.eq.s32.totalorder %s18, 0
      %p39 = por %p37, %p38
      %p40 = scmp.ne.s32.totalorder %s26, %s27
      %p41 = scmp.eq.s32.totalorder %s19, 1
      %p42 = por %p40, %p41
      %p44 = scmp.ne.s32.totalorder %s27, %s43
      %p45 = scmp.eq.s32.totalorder %s19, 0
      %p46 = por %p44, %p45
      %s47 = ssub.s32 %s13, %s20
      %p48 = scmp.eq.s32.totalorder %s47, 0
      %s50 = sadd.s32 %s49, 1
      %s51 = scalar_select %p48, %s49, %s50
      %p54 = pneg %p48
      %p55 = scmp.eq.s32.totalorder %s13, 1
      %p56 = por %p54, %p55
      %p57 = scmp.ne.s32.totalorder %s49, %s52
      %p58 = scmp.eq.s32.totalorder %s13, 0
      %p59 = por %p57, %p58
      %p60 = scmp.ne.s32.totalorder %s49, %s52
      %p61 = scmp.eq.s32.totalorder %s18, 1
      %p62 = por %p60, %p61
      %p63 = scmp.ne.s32.totalorder %s52, %s53
      %p64 = scmp.eq.s32.totalorder %s18, 0
      %p65 = por %p63, %p64
      %p66 = scmp.ne.s32.totalorder %s52, %s53
      %p67 = scmp.eq.s32.totalorder %s19, 1
      %p68 = por %p66, %p67
      %p70 = scmp.ne.s32.totalorder %s53, %s69
      %p71 = scmp.eq.s32.totalorder %s19, 0
      %p72 = por %p70, %p71
      %p73 = scmp.le.s32.totalorder 1, %s13
      %p74 = scmp.lt.s32.totalorder %s13, 3
      %p75 = pnand %p73, %p74
      %p76 = pneg %p75
      // Predicated region
      $region9: #{tpu_custom_call.1} parent=5 // pred_check
        _
      $region10: #{tpu_custom_call.1} parent=5 // pred_check_branch
        %78 = sbr.rel (%p75) target = $region12
      $region11: #{tpu_custom_call.1} parent=5 // pred_region
        %s79 = ssub.s32 %s13, 1
      $region12: #{tpu_custom_call.1} parent=5 // pred_fallthru
        _
      %p80 = scmp.lt.s32.totalorder %s13, 2
      // Predicated region
      $region13: #{tpu_custom_call.1} parent=5 // pred_check
        %p81 = pneg %p80
      $region14: #{tpu_custom_call.1} parent=5 // pred_check_branch
        %83 = sbr.rel (%p81) target = $region16
      $region15: #{tpu_custom_call.1} parent=5 // pred_region
        // Predicated region
        $region17: #{tpu_custom_call.1} parent=15 // pred_check
          %p84 = pneg %p33
        $region18: #{tpu_custom_call.1} parent=15 // pred_check_branch
          %86 = sbr.rel (%p84) target = $region20
        $region19: #{tpu_custom_call.1} parent=15 // pred_region
          %s87 = sand.u32 %s23, 1
          %s88 = scalar_lea.sflag [#allocation4], %s87
          %s89 = sand.u32 %s23, 1
          %s90 = smul.addr %s89, 64
          %s91 = scalar_lea.vmem [#allocation3], %s90
          %s92 = smul.u32 4, %s13
          %s94 = ssub.s32 1024, 1024
          %95 = vsyncadd %s88, %s94
          %s96 = smul.addr %s92, 2
          %s97 = smul.addr %s96, 128
          %s98 = scalar_lea.hbm %s0, %s97
          %s99 = sshll.u32 %s91, 4
          %s100 = int_to_ptr.vmem [resolvable:$true] %s99
          %105 = dma.hbm_to_vmem [thread:$0]  %s98, 1024, %s100, %s88, 128, 128, 8
        $region20: #{tpu_custom_call.1} parent=15 // pred_fallthru
          _
      $region16: #{tpu_custom_call.1} parent=5 // pred_fallthru
        _
      %p106 = scmp.le.s32.totalorder 1, %s13
      %p107 = scmp.lt.s32.totalorder %s13, 3
      %p108 = pnand %p106, %p107
      %p109 = pneg %p108
      // Predicated region
      $region21: #{tpu_custom_call.1} parent=5 // pred_check
        _
      $region22: #{tpu_custom_call.1} parent=5 // pred_check_branch
        %111 = sbr.rel (%p108) target = $region24
      $region23: #{tpu_custom_call.1} parent=5 // pred_region
        %s112 = ssub.s32 %s13, 1
        %s113 = sand.u32 %s26, 1
        %s114 = scalar_lea.sflag [#allocation4], %s113
        %s115 = sand.u32 %s26, 1
        %s116 = smul.addr %s115, 64
        %s117 = scalar_lea.vmem [#allocation3], %s116
        // Predicated region
        $region25: #{tpu_custom_call.1} parent=23 // pred_check
          %p118 = pneg %p39
        $region26: #{tpu_custom_call.1} parent=23 // pred_check_branch
          %120 = sbr.rel (%p118) target = $region28
        $region27: #{tpu_custom_call.1} parent=23 // pred_region
          %121 = dma.done %s114, 1024
        $region28: #{tpu_custom_call.1} parent=23 // pred_fallthru
          _
        %s122 = sand.u32 %s26, 1
        %s123 = scalar_lea.sflag [#allocation4], %s122
        %s124 = sand.u32 %s26, 1
        %s125 = smul.addr %s124, 64
        %s126 = scalar_lea.vmem [#allocation3], %s125
        %p127 = pneg %p39
        %p128 = pneg %p36
        %p129 = pneg %p65
        %p130 = pneg %p62
        %s131 = sand.u32 %s52, 1
        %s132 = scalar_lea.sflag [#allocation5], %s131
        %s133 = sand.u32 %s52, 1
        %s134 = smul.addr %s133, 64
        %s135 = scalar_lea.vmem [#allocation6], %s134
        %s136 = smul.u32 4, %s18
        %s137 = smul.u32 4, %s18
        %vm138 = vcmask 146432
        %139 = vst.msk [vmem:[#allocation2] sm:$0xff] %vm138, 0.0
        %140 = vst.msk [vmem:[#allocation2 + $0x8] sm:$0xff] %vm138, 0.0
        %vm141 = vcmask 140288
        %142 = vst.msk [vmem:[#allocation2 + $0x10] sm:$0x3] %vm141, 0.0
        %143 = vst.msk [vmem:[#allocation2 + $0x18] sm:$0xff] %vm138, 0.0
        %144 = vst.msk [vmem:[#allocation2 + $0x20] sm:$0xff] %vm138, 0.0
        %145 = vst.msk [vmem:[#allocation2 + $0x28] sm:$0x3] %vm141, 0.0
        %146 = vst.msk [vmem:[#allocation2 + $0x30] sm:$0xff] %vm138, 0.0
        %147 = vst.msk [vmem:[#allocation2 + $0x38] sm:$0xff] %vm138, 0.0
        %148 = vst.msk [vmem:[#allocation2 + $0x40] sm:$0x3] %vm141, 0.0
        %149 = vst.msk [vmem:[#allocation2 + $0x48] sm:$0xff] %vm138, 0.0
        %150 = vst.msk [vmem:[#allocation2 + $0x50] sm:$0xff] %vm138, 0.0
        %151 = vst.msk [vmem:[#allocation2 + $0x58] sm:$0x3] %vm141, 0.0
        %v152 = vld [vmem:[%s117] sm:$0xff]
        %v153 = vld [vmem:[%s117 + $0x8] sm:$0xff]
        %v154 = vld [vmem:[%s117 + $0x10] sm:$0xff]
        %v155 = vld [vmem:[%s117 + $0x18] sm:$0xff]
        %v156 = vld [vmem:[%s117 + $0x20] sm:$0xff]
        %v157 = vld [vmem:[%s117 + $0x28] sm:$0xff]
        %v158 = vld [vmem:[%s117 + $0x30] sm:$0xff]
        %v159 = vld [vmem:[%s117 + $0x38] sm:$0xff]
        %168 = vrot.lane.b32.xlu0 %v152, 1
        %v169 = vpop.permute.xlu0 %168
        %170 = vrot.lane.b32.xlu0 %v153, 1
        %v171 = vpop.permute.xlu0 %170
        %172 = vrot.lane.b32.xlu0 %v154, 1
        %v173 = vpop.permute.xlu0 %172
        %174 = vrot.lane.b32.xlu0 %v155, 1
        %v175 = vpop.permute.xlu0 %174
        %176 = vrot.lane.b32.xlu0 %v156, 1
        %v177 = vpop.permute.xlu0 %176
        %178 = vrot.lane.b32.xlu0 %v157, 1
        %v179 = vpop.permute.xlu0 %178
        %180 = vrot.lane.b32.xlu0 %v158, 1
        %v181 = vpop.permute.xlu0 %180
        %182 = vrot.lane.b32.xlu0 %v159, 1
        %v183 = vpop.permute.xlu0 %182
        %vm192 = vcmask 138248
        %193 = vst.msk [vmem:[#allocation2 + $0x1] sm:$0xff] %vm192, %v169
        %194 = vst.msk [vmem:[#allocation2 + $0x9] sm:$0xff] %vm192, %v171
        %195 = vst.msk [vmem:[#allocation2 + $0x19] sm:$0xff] %vm192, %v173
        %196 = vst.msk [vmem:[#allocation2 + $0x21] sm:$0xff] %vm192, %v175
        %197 = vst.msk [vmem:[#allocation2 + $0x31] sm:$0xff] %vm192, %v177
        %198 = vst.msk [vmem:[#allocation2 + $0x39] sm:$0xff] %vm192, %v179
        %199 = vst.msk [vmem:[#allocation2 + $0x49] sm:$0xff] %vm192, %v181
        %200 = vst.msk [vmem:[#allocation2 + $0x51] sm:$0xff] %vm192, %v183
        %v201 = vld [vmem:[#allocation2] sm:$0xff]
        %v202 = vld [vmem:[#allocation2 + $0x8] sm:$0xff]
        %v203 = vld [vmem:[#allocation2 + $0x10] sm:$0x3]
        %v204 = vld [vmem:[#allocation2 + $0x18] sm:$0xff]
        %v205 = vld [vmem:[#allocation2 + $0x20] sm:$0xff]
        %v206 = vld [vmem:[#allocation2 + $0x28] sm:$0x3]
        %v207 = vld [vmem:[#allocation2 + $0x30] sm:$0xff]
        %v208 = vld [vmem:[#allocation2 + $0x38] sm:$0xff]
        %v209 = vld [vmem:[#allocation2 + $0x40] sm:$0x3]
        %v210 = vld [vmem:[#allocation2 + $0x48] sm:$0xff]
        %v211 = vld [vmem:[#allocation2 + $0x50] sm:$0xff]
        %v212 = vld [vmem:[#allocation2 + $0x58] sm:$0x3]
        %225 = vrot.lane.b32.xlu0 %v201, 127
        %v226 = vpop.permute.xlu0 %225
        %227 = vrot.lane.b32.xlu0 %v202, 127
        %v228 = vpop.permute.xlu0 %227
        %229 = vrot.lane.b32.xlu0 %v203, 127
        %v230 = vpop.permute.xlu0 %229
        %231 = vrot.lane.b32.xlu0 %v204, 127
        %v232 = vpop.permute.xlu0 %231
        %233 = vrot.lane.b32.xlu0 %v205, 127
        %v234 = vpop.permute.xlu0 %233
        %235 = vrot.lane.b32.xlu0 %v206, 127
        %v236 = vpop.permute.xlu0 %235
        %237 = vrot.lane.b32.xlu0 %v207, 127
        %v238 = vpop.permute.xlu0 %237
        %239 = vrot.lane.b32.xlu0 %v208, 127
        %v240 = vpop.permute.xlu0 %239
        %241 = vrot.lane.b32.xlu0 %v209, 127
        %v242 = vpop.permute.xlu0 %241
        %243 = vrot.lane.b32.xlu0 %v210, 127
        %v244 = vpop.permute.xlu0 %243
        %245 = vrot.lane.b32.xlu0 %v211, 127
        %v246 = vpop.permute.xlu0 %245
        %247 = vrot.lane.b32.xlu0 %v212, 127
        %v248 = vpop.permute.xlu0 %247
        %v261 = vadd.f32 %v201, %v226
        %v262 = vadd.f32 %v202, %v228
        %v263 = vadd.f32 %v203, %v230
        %v264 = vadd.f32 %v204, %v232
        %v265 = vadd.f32 %v205, %v234
        %v266 = vadd.f32 %v206, %v236
        %v267 = vadd.f32 %v207, %v238
        %v268 = vadd.f32 %v208, %v240
        %v269 = vadd.f32 %v209, %v242
        %v270 = vadd.f32 %v210, %v244
        %v271 = vadd.f32 %v211, %v246
        %v272 = vadd.f32 %v212, %v248
        %273 = vrot.lane.b32.xlu0 %v201, 126
        %v274 = vpop.permute.xlu0 %273
        %275 = vrot.lane.b32.xlu0 %v202, 126
        %v276 = vpop.permute.xlu0 %275
        %277 = vrot.lane.b32.xlu0 %v203, 126
        %v278 = vpop.permute.xlu0 %277
        %279 = vrot.lane.b32.xlu0 %v204, 126
        %v280 = vpop.permute.xlu0 %279
        %281 = vrot.lane.b32.xlu0 %v205, 126
        %v282 = vpop.permute.xlu0 %281
        %283 = vrot.lane.b32.xlu0 %v206, 126
        %v284 = vpop.permute.xlu0 %283
        %285 = vrot.lane.b32.xlu0 %v207, 126
        %v286 = vpop.permute.xlu0 %285
        %287 = vrot.lane.b32.xlu0 %v208, 126
        %v288 = vpop.permute.xlu0 %287
        %289 = vrot.lane.b32.xlu0 %v209, 126
        %v290 = vpop.permute.xlu0 %289
        %291 = vrot.lane.b32.xlu0 %v210, 126
        %v292 = vpop.permute.xlu0 %291
        %293 = vrot.lane.b32.xlu0 %v211, 126
        %v294 = vpop.permute.xlu0 %293
        %295 = vrot.lane.b32.xlu0 %v212, 126
        %v296 = vpop.permute.xlu0 %295
        %v309 = vadd.f32 %v261, %v274
        %v310 = vadd.f32 %v262, %v276
        %v311 = vadd.f32 %v263, %v278
        %v312 = vadd.f32 %v264, %v280
        %v313 = vadd.f32 %v265, %v282
        %v314 = vadd.f32 %v266, %v284
        %v315 = vadd.f32 %v267, %v286
        %v316 = vadd.f32 %v268, %v288
        %v317 = vadd.f32 %v269, %v290
        %v318 = vadd.f32 %v270, %v292
        %v319 = vadd.f32 %v271, %v294
        %v320 = vadd.f32 %v272, %v296
        %vm333 = vcmask 1046528
        %v334 = vrot.slane %v309, 1
        %v335 = vrot.slane %v310, 1
        %v336 = vsel %vm333, %v334, %v335
        %v337 = vrot.slane %v311, 1
        %v338 = vsel %vm333, %v335, %v337
        %v339 = vrot.slane %v312, 1
        %v340 = vrot.slane %v313, 1
        %v341 = vsel %vm333, %v339, %v340
        %v342 = vrot.slane %v314, 1
        %v343 = vsel %vm333, %v340, %v342
        %v344 = vrot.slane %v315, 1
        %v345 = vrot.slane %v316, 1
        %v346 = vsel %vm333, %v344, %v345
        %v347 = vrot.slane %v317, 1
        %v348 = vsel %vm333, %v345, %v347
        %v349 = vrot.slane %v318, 1
        %v350 = vrot.slane %v319, 1
        %v351 = vsel %vm333, %v349, %v350
        %v352 = vrot.slane %v320, 1
        %v353 = vsel %vm333, %v350, %v352
        %v362 = vadd.f32 %v309, %v336
        %v363 = vadd.f32 %v310, %v338
        %v364 = vadd.f32 %v312, %v341
        %v365 = vadd.f32 %v313, %v343
        %v366 = vadd.f32 %v315, %v346
        %v367 = vadd.f32 %v316, %v348
        %v368 = vadd.f32 %v318, %v351
        %v369 = vadd.f32 %v319, %v353
        %vm370 = vcmask 1045504
        %v371 = vrot.slane %v309, 2
        %v372 = vrot.slane %v310, 2
        %v373 = vsel %vm370, %v371, %v372
        %v374 = vrot.slane %v311, 2
        %v375 = vsel %vm370, %v372, %v374
        %v376 = vrot.slane %v312, 2
        %v377 = vrot.slane %v313, 2
        %v378 = vsel %vm370, %v376, %v377
        %v379 = vrot.slane %v314, 2
        %v380 = vsel %vm370, %v377, %v379
        %v381 = vrot.slane %v315, 2
        %v382 = vrot.slane %v316, 2
        %v383 = vsel %vm370, %v381, %v382
        %v384 = vrot.slane %v317, 2
        %v385 = vsel %vm370, %v382, %v384
        %v386 = vrot.slane %v318, 2
        %v387 = vrot.slane %v319, 2
        %v388 = vsel %vm370, %v386, %v387
        %v389 = vrot.slane %v320, 2
        %v390 = vsel %vm370, %v387, %v389
        %v399 = vadd.f32 %v362, %v373
        %v400 = vadd.f32 %v363, %v375
        %v401 = vadd.f32 %v364, %v378
        %v402 = vadd.f32 %v365, %v380
        %v403 = vadd.f32 %v366, %v383
        %v404 = vadd.f32 %v367, %v385
        %v405 = vadd.f32 %v368, %v388
        %v406 = vadd.f32 %v369, %v390
        %v407 = vmul.f32 %v399, 0.11111111
        %v408 = vmul.f32 %v400, 0.11111111
        %v409 = vmul.f32 %v401, 0.11111111
        %v410 = vmul.f32 %v402, 0.11111111
        %v411 = vmul.f32 %v403, 0.11111111
        %v412 = vmul.f32 %v404, 0.11111111
        %v413 = vmul.f32 %v405, 0.11111111
        %v414 = vmul.f32 %v406, 0.11111111
        %vm415 = vcmask 130048
        %416 = vst.msk [vmem:[%s135] sm:$0xff] %vm415, %v407
        %417 = vst.msk [vmem:[%s135 + $0x8] sm:$0xff] %vm415, %v408
        %418 = vst.msk [vmem:[%s135 + $0x10] sm:$0xff] %vm415, %v409
        %419 = vst.msk [vmem:[%s135 + $0x18] sm:$0xff] %vm415, %v410
        %420 = vst.msk [vmem:[%s135 + $0x20] sm:$0xff] %vm415, %v411
        %421 = vst.msk [vmem:[%s135 + $0x28] sm:$0xff] %vm415, %v412
        %422 = vst.msk [vmem:[%s135 + $0x30] sm:$0xff] %vm415, %v413
        %423 = vst.msk [vmem:[%s135 + $0x38] sm:$0xff] %vm415, %v414
        %s424 = sand.u32 %s52, 1
        %s425 = scalar_lea.sflag [#allocation5], %s424
        %s426 = sand.u32 %s52, 1
        %s427 = smul.addr %s426, 64
        %s428 = scalar_lea.vmem [#allocation6], %s427
        // Predicated region
        $region29: #{tpu_custom_call.1} parent=23 // pred_check
          %p429 = pneg %p62
        $region30: #{tpu_custom_call.1} parent=23 // pred_check_branch
          %431 = sbr.rel (%p429) target = $region32
        $region31: #{tpu_custom_call.1} parent=23 // pred_region
          %s432 = smul.u32 4, %s18
          %s434 = ssub.s32 1024, 1024
          %435 = vsyncadd %s425, %s434
          %s436 = smul.addr %s432, 2
          %s437 = smul.addr %s436, 128
          %s438 = scalar_lea.hbm %s1, %s437
          %s439 = sshll.u32 %s428, 4
          %s440 = int_to_ptr.vmem [resolvable:$true] %s439
          %445 = dma.vmem_to_hbm [thread:$0]  %s440, 1024, %s438, %s425, 128, 128, 8
        $region32: #{tpu_custom_call.1} parent=23 // pred_fallthru
          _
      $region24: #{tpu_custom_call.1} parent=5 // pred_fallthru
        _
      %p446 = scmp.le.s32.totalorder 2, %s13
      // Predicated region
      $region33: #{tpu_custom_call.1} parent=5 // pred_check
        %p447 = pneg %p446
      $region34: #{tpu_custom_call.1} parent=5 // pred_check_branch
        %449 = sbr.rel (%p447) target = $region36
      $region35: #{tpu_custom_call.1} parent=5 // pred_region
        %s450 = ssub.s32 %s13, 2
        // Predicated region
        $region37: #{tpu_custom_call.1} parent=35 // pred_check
          %p451 = pneg %p68
        $region38: #{tpu_custom_call.1} parent=35 // pred_check_branch
          %453 = sbr.rel (%p451) target = $region40
        $region39: #{tpu_custom_call.1} parent=35 // pred_region
          %s454 = sand.u32 %s53, 1
          %s455 = scalar_lea.sflag [#allocation5], %s454
          %s456 = sand.u32 %s53, 1
          %s457 = smul.addr %s456, 64
          %s458 = scalar_lea.vmem [#allocation6], %s457
          %459 = dma.done %s455, 1024
        $region40: #{tpu_custom_call.1} parent=35 // pred_fallthru
          _
      $region36: #{tpu_custom_call.1} parent=5 // pred_fallthru
        _
    $region6: #{tpu_custom_call.1} parent=1 // loop_footer
      %s17 = sadd.s32 1, %s13
    $region7: #{tpu_custom_call.1} parent=1 // loop_footer_branch
      %12 = sbr.rel target = $region3
    $region8: #{tpu_custom_call.1} parent=1 // loop_exit
      _
    %460 = vsyncpa [#allocation4], 1
    %s461 = scalar_lea.sflag [#allocation4], 1
    %462 = vsyncpa %s461, 1
    %463 = vsyncpa [#allocation5], 1
    %s464 = scalar_lea.sflag [#allocation5], 1
    %465 = vsyncpa %s464, 1

</llo_original>
